<compile_context>
chip_gen: v6e
topology: v6e:2x2x1
jax: 0.10.0
libtpu: 0.0.40
codegen_flags: <defaults>
</compile_context>

<pallas_src>
import functools

import jax
import jax.numpy as jnp
from jax.experimental import pallas as pl
from jax.experimental.pallas import tpu as pltpu

LANE = 128
SUBLANE = 8
TILE_T = 8  # GRU timesteps per grid step


def _round_up(x, m):
    return (x + m - 1) // m * m


_VMEM = functools.partial(pl.BlockSpec, memory_space=pltpu.MemorySpace.VMEM)


# ----------------------------- Pallas kernels ------------------------------

def _encode_project_kernel(img_ref, fcw_ref, fcb_ref, emb_ref, wih_ref,
                           bih_ref, feat_ref, gi_ref):
    # Encoder: global-average-pool over spatial + fc head.
    pooled = jnp.mean(img_ref[...], axis=-1)                       # (Bp, C) f32
    feat_ref[...] = (jnp.dot(pooled.astype(jnp.bfloat16), fcw_ref[...],
                             preferred_element_type=jnp.float32)
                     + fcb_ref[...]).astype(feat_ref.dtype)

    # Hoisted GRU input projection for ALL timesteps as one big MXU matmul.
    Tp, Bp, E = emb_ref.shape
    x = emb_ref[...].reshape(Tp * Bp, E)                           # bf16
    gi = (jnp.dot(x, wih_ref[...], preferred_element_type=jnp.float32)
          + bih_ref[...])
    gi_ref[...] = gi.reshape(Tp, Bp, gi.shape[-1]).astype(gi_ref.dtype)


def _gru_kernel(gi_ref, h0_ref, whh_ref, bhh_ref, out_ref, h_state):
    # TILE_T GRU steps per grid iteration; h_state carries across the grid.
    @pl.when(pl.program_id(0) == 0)
    def _():
        h_state[...] = h0_ref[...]

    Hp = h0_ref.shape[-1]
    whh = whh_ref[...]          # (Hp, 3*Hp) bf16, loop-invariant
    bhh = bhh_ref[...]          # (1, 3*Hp)  f32

    def step(t, h):
        gi = gi_ref[t]                                             # (Bp, 3*Hp) f32
        gh = jnp.dot(h.astype(jnp.bfloat16), whh,
                     preferred_element_type=jnp.float32) + bhh
        # PyTorch GRU gate order (r, z, n); Hp-aligned slices are free views.
        r = jax.nn.sigmoid(gi[:, 0:Hp] + gh[:, 0:Hp])
        z = jax.nn.sigmoid(gi[:, Hp:2 * Hp] + gh[:, Hp:2 * Hp])
        n = jnp.tanh(gi[:, 2 * Hp:3 * Hp] + r * gh[:, 2 * Hp:3 * Hp])
        h_new = (1.0 - z) * n + z * h
        out_ref[t] = h_new
        return h_new

    h_state[...] = jax.lax.fori_loop(0, gi_ref.shape[0], step, h_state[...],
                                     unroll=True)


def _head_kernel(h_ref, f_ref, wh_ref, wf_ref, b_ref, out_ref):
    # linear(cat([hiddens, features], dim=-1)) == h @ Wh + f @ Wf + b
    h = h_ref[...].astype(jnp.bfloat16)
    f = f_ref[...].astype(jnp.bfloat16)
    out_ref[...] = (jnp.dot(h, wh_ref[...], preferred_element_type=jnp.float32)
                    + jnp.dot(f, wf_ref[...], preferred_element_type=jnp.float32)
                    + b_ref[...]).astype(out_ref.dtype)


# ------------------------------- wrappers -----------------------------------

def encode_and_project(images_p, emb_p, fc_w, fc_b, w_ih, b_ih, Hp):
    Bp = images_p.shape[0]
    Tp = emb_p.shape[0]
    return pl.pallas_call(
        _encode_project_kernel,
        out_shape=(jax.ShapeDtypeStruct((Bp, Hp), jnp.float32),
                   jax.ShapeDtypeStruct((Tp, Bp, 3 * Hp), jnp.float32)),
        in_specs=[_VMEM()] * 6,
        out_specs=(_VMEM(), _VMEM()),
    )(images_p, fc_w, fc_b, emb_p, w_ih, b_ih)


def gru_forward(gi, h0, w_hh, b_hh):
    Tp, Bp, threeHp = gi.shape
    Hp = threeHp // 3
    return pl.pallas_call(
        _gru_kernel,
        out_shape=jax.ShapeDtypeStruct((Tp, Bp, Hp), jnp.float32),
        grid=(Tp // TILE_T,),
        in_specs=[
            pl.BlockSpec((TILE_T, Bp, 3 * Hp), lambda c: (c, 0, 0)),
            pl.BlockSpec((Bp, Hp), lambda c: (0, 0)),
            pl.BlockSpec((Hp, 3 * Hp), lambda c: (0, 0)),
            pl.BlockSpec((1, 3 * Hp), lambda c: (0, 0)),
        ],
        out_specs=pl.BlockSpec((TILE_T, Bp, Hp), lambda c: (c, 0, 0)),
        scratch_shapes=[pltpu.VMEM((Bp, Hp), jnp.float32)],
        compiler_params=pltpu.CompilerParams(
            dimension_semantics=("arbitrary",)),
    )(gi, h0, w_hh, b_hh)


def output_head(h2d, f2d, wh, wf, b, tile_n, tile_v):
    Np, Hp = h2d.shape
    Vp = wh.shape[1]
    return pl.pallas_call(
        _head_kernel,
        out_shape=jax.ShapeDtypeStruct((Np, Vp), jnp.float32),
        grid=(Np // tile_n, Vp // tile_v),
        in_specs=[
            pl.BlockSpec((tile_n, Hp), lambda i, j: (i, 0)),
            pl.BlockSpec((tile_n, Hp), lambda i, j: (i, 0)),
            pl.BlockSpec((Hp, tile_v), lambda i, j: (0, j)),
            pl.BlockSpec((Hp, tile_v), lambda i, j: (0, j)),
            pl.BlockSpec((1, tile_v), lambda i, j: (0, j)),
        ],
        out_specs=pl.BlockSpec((tile_n, tile_v), lambda i, j: (i, j)),
        compiler_params=pltpu.CompilerParams(
            dimension_semantics=("parallel", "parallel"),
            vmem_limit_bytes=48 * 1024 * 1024),
    )(h2d, f2d, wh, wf, b)


# --------------------------------- model ------------------------------------

class CNNtoRNN:
    def __init__(self, embed_size, hidden_size, vocab_size, num_layers,
                 in_channels, key):
        # The reference forward only works when h0 (= features) is shape-
        # compatible with the GRU hidden state: num_layers==1, E==H.
        assert num_layers == 1 and embed_size == hidden_size
        self.E, self.H, self.V = embed_size, hidden_size, vocab_size
        Hp = _round_up(hidden_size, LANE)
        Vp = _round_up(vocab_size, LANE)
        if Vp > 512:
            Vp = _round_up(Vp, 512)
            self.tile_v = 512
        else:
            self.tile_v = Vp
        self.Hp, self.Vp = Hp, Vp

        ks = jax.random.split(key, 8)
        s = 0.1
        E, H, V = embed_size, hidden_size, vocab_size

        # TODO(synk): pretrained ResNet18 backbone + torchvision preprocess are
        # not replicated; encoder stand-in = global-avg-pool + replaced fc head.
        # hid_2mu / hid_2sigma exist in the torch module but are unused in forward.
        fc_w = s * jax.random.normal(ks[0], (in_channels, E), jnp.float32)
        self.fc_w = jnp.zeros((in_channels, Hp), jnp.float32).at[:, :E].set(
            fc_w).astype(jnp.bfloat16)
        self.fc_b = jnp.zeros((1, Hp), jnp.float32).at[:, :E].set(
            s * jax.random.normal(ks[1], (1, E), jnp.float32))

        emb = s * jax.random.normal(ks[2], (V, E), jnp.float32)
        self.embed_w = emb.at[0].set(0.0).astype(jnp.bfloat16)  # padding_idx=0

        # GRU weights laid out gate-blocked (r, z, n) with each gate padded to
        # Hp so in-kernel gate slices are lane-tile-aligned (no relayout copies).
        w_ih = s * jax.random.normal(ks[3], (E, 3, H), jnp.float32)
        self.w_ih = jnp.zeros((E, 3, Hp), jnp.float32).at[:, :, :H].set(
            w_ih).reshape(E, 3 * Hp).astype(jnp.bfloat16)
        w_hh = s * jax.random.normal(ks[4], (H, 3, H), jnp.float32)
        self.w_hh = jnp.zeros((Hp, 3, Hp), jnp.float32).at[:H, :, :H].set(
            w_hh).reshape(Hp, 3 * Hp).astype(jnp.bfloat16)
        b_ih = s * jax.random.normal(ks[5], (1, 3, H), jnp.float32)
        self.b_ih = jnp.zeros((1, 3, Hp), jnp.float32).at[:, :, :H].set(
            b_ih).reshape(1, 3 * Hp)
        b_hh = s * jax.random.normal(ks[6], (1, 3, H), jnp.float32)
        self.b_hh = jnp.zeros((1, 3, Hp), jnp.float32).at[:, :, :H].set(
            b_hh).reshape(1, 3 * Hp)

        # linear(hidden_size*2 -> vocab) split into hidden-part and feature-part.
        lin = s * jax.random.normal(ks[7], (2 * H, V), jnp.float32)
        self.lin_wh = jnp.zeros((Hp, Vp), jnp.float32).at[:H, :V].set(
            lin[:H]).astype(jnp.bfloat16)
        self.lin_wf = jnp.zeros((Hp, Vp), jnp.float32).at[:H, :V].set(
            lin[H:]).astype(jnp.bfloat16)
        self.lin_b = jnp.zeros((1, Vp), jnp.float32)
        # nn.Dropout(0.1) is defined in the torch module but never applied in forward.

    def __call__(self, images, caption, lengths, rng):
        # lengths: python list of ints, sorted descending (pack_padded_sequence
        # with enforce_sorted=True requires this); baked in at trace time.
        assert list(lengths) == sorted(lengths, reverse=True)
        B, C, Hi, Wi = images.shape
        Bp = _round_up(B, SUBLANE)
        Hp = self.Hp

        eff = [int(l) - 1 for l in lengths]
        t_max = max(eff)
        T_pad = _round_up(t_max, TILE_T)

        # ---- pad inputs to sublane/lane friendly shapes (plain-JAX glue) ----
        x = images.reshape(B, C, Hi * Wi).astype(jnp.float32)
        x_p = jnp.zeros((Bp, C, Hi * Wi), jnp.float32).at[:B].set(x)

        # embedding lookup (gather) -- plain JAX glue
        emb = jnp.take(self.embed_w, caption[:, :t_max], axis=0)   # (B,Tm,E) bf16
        emb_p = jnp.zeros((T_pad, Bp, self.E), jnp.bfloat16)
        emb_p = emb_p.at[:t_max, :B].set(jnp.transpose(emb, (1, 0, 2)))

        # ---- fused encoder + hoisted GRU input projection (one launch) ----
        features, gi = encode_and_project(x_p, emb_p, self.fc_w, self.fc_b,
                                          self.w_ih, self.b_ih, Hp)

        mu = features[:B, :self.E]
        sigma = mu
        # epsilon ~ U[0,1); z_reparametrized is unused downstream (matches torch).
        epsilon = jax.random.uniform(rng, sigma.shape, sigma.dtype)
        _z_reparametrized = mu + sigma * epsilon

        # ---- GRU recurrence with h0 = features (TILE_T steps / grid iter) ----
        hiddens = gru_forward(gi, features, self.w_hh, self.b_hh)  # (Tp,Bp,Hp)

        # ---- packed-sequence order: time-major, only steps t < (length-1) ----
        t_idx, b_idx = [], []
        for t in range(t_max):
            for b in range(B):
                if eff[b] > t:
                    t_idx.append(t)
                    b_idx.append(b)
        N = len(t_idx)
        Np = _round_up(N, SUBLANE)
        if Np > 256:
            tile_n = 256
            Np = _round_up(Np, tile_n)
        else:
            tile_n = Np
        pad = Np - N
        t_idx = jnp.asarray(t_idx + [0] * pad, jnp.int32)
        b_idx = jnp.asarray(b_idx + [0] * pad, jnp.int32)
        packed_h = hiddens[t_idx, b_idx]                            # (Np, Hp)
        packed_f = features[b_idx]                                  # (Np, Hp)

        # ---- output head: linear(cat([h, f])) = h @ Wh + f @ Wf + b ----
        out = output_head(packed_h, packed_f, self.lin_wh, self.lin_wf,
                          self.lin_b, tile_n, self.tile_v)          # (Np, Vp)
        return out[:N, :self.V], mu, sigma


# --------------------------------- main --------------------------------------

if __name__ == "__main__":
    B, C, Himg, Wimg = 2, 4, 16, 16
    embed_size = hidden_size = 32
    vocab_size = 64
    num_layers = 1
    seq_len = 8

    key = jax.random.PRNGKey(0)
    k_img, k_cap, k_eps, k_par = jax.random.split(key, 4)

    images = jax.random.normal(k_img, (B, C, Himg, Wimg), jnp.float32)
    caption = jax.random.randint(k_cap, (B, seq_len), 0, vocab_size, jnp.int32)
    lengths = [8, 6]   # sorted descending, as pack_padded_sequence requires

    model = CNNtoRNN(embed_size, hidden_size, vocab_size, num_layers, C, k_par)
    outputs, mu, sigma = model(images, caption, lengths, k_eps)
    jax.block_until_ready((outputs, mu, sigma))

    assert outputs.shape == (sum(l - 1 for l in lengths), vocab_size)
    assert mu.shape == (B, embed_size) and sigma.shape == (B, embed_size)
    print("KERNEL_OK")
</pallas_src>

<mosaic_0001>
module attributes {stable_mosaic.version = 11 : i64} {
  func.func @_encode_project_kernel(%arg0: memref<8x4x256xf32, #tpu.memory_space<vmem>>, %arg1: memref<4x128xbf16, #tpu.memory_space<vmem>>, %arg2: memref<1x128xf32, #tpu.memory_space<vmem>>, %arg3: memref<8x8x32xbf16, #tpu.memory_space<vmem>>, %arg4: memref<32x384xbf16, #tpu.memory_space<vmem>>, %arg5: memref<1x384xf32, #tpu.memory_space<vmem>>, %arg6: memref<8x128xf32, #tpu.memory_space<vmem>>, %arg7: memref<8x8x384xf32, #tpu.memory_space<vmem>>) attributes {dimension_semantics = [], scalar_prefetch = 0 : i64, scratch_operands = 0 : i64, tpu.core_type = #tpu.core_type<tc>} {
    %c0 = arith.constant 0 : index
    %c0_0 = arith.constant 0 : index
    %c0_1 = arith.constant 0 : index
    %0 = vector.load %arg0[%c0, %c0_0, %c0_1] : memref<8x4x256xf32, #tpu.memory_space<vmem>>, vector<8x4x256xf32>
    %cst = arith.constant dense<0.000000e+00> : vector<8x4xf32>
    %1 = vector.multi_reduction <add>, %0, %cst [2] : vector<8x4x256xf32> to vector<8x4xf32>
    %cst_2 = arith.constant 2.560000e+02 : f32
    %2 = vector.broadcast %cst_2 : f32 to vector<8x4xf32>
    %3 = arith.divf %1, %2 : vector<8x4xf32>
    %4 = arith.truncf %3 : vector<8x4xf32> to vector<8x4xbf16>
    %c0_3 = arith.constant 0 : index
    %c0_4 = arith.constant 0 : index
    %5 = vector.load %arg1[%c0_3, %c0_4] : memref<4x128xbf16, #tpu.memory_space<vmem>>, vector<4x128xbf16>
    %cst_5 = arith.constant dense<0.000000e+00> : vector<8x128xf32>
    %6 = tpu.matmul %4, %5, %cst_5 {dimension_numbers = #tpu.dot_dimension_numbers<[1], [0], [0], [1], [0, 0, 1, 1], [], []>} : vector<8x4xbf16>, vector<4x128xbf16>, vector<8x128xf32> -> vector<8x128xf32>
    %c0_6 = arith.constant 0 : index
    %c0_7 = arith.constant 0 : index
    %7 = vector.load %arg2[%c0_6, %c0_7] : memref<1x128xf32, #tpu.memory_space<vmem>>, vector<1x128xf32>
    %8 = vector.broadcast %7 : vector<1x128xf32> to vector<8x128xf32>
    %9 = arith.addf %6, %8 : vector<8x128xf32>
    %c0_8 = arith.constant 0 : index
    %c0_9 = arith.constant 0 : index
    %10 = vector.load %arg6[%c0_8, %c0_9] : memref<8x128xf32, #tpu.memory_space<vmem>>, vector<8x128xf32>
    tpu.vector_store %arg6[%c0_8, %c0_9], %9 {strides = array<i32>} : memref<8x128xf32, #tpu.memory_space<vmem>>, vector<8x128xf32>,
    %c0_10 = arith.constant 0 : index
    %c0_11 = arith.constant 0 : index
    %c0_12 = arith.constant 0 : index
    %11 = vector.load %arg3[%c0_10, %c0_11, %c0_12] : memref<8x8x32xbf16, #tpu.memory_space<vmem>>, vector<8x8x32xbf16>
    %12 = vector.shape_cast %11 : vector<8x8x32xbf16> to vector<64x32xbf16>
    %c0_13 = arith.constant 0 : index
    %c0_14 = arith.constant 0 : index
    %13 = vector.load %arg4[%c0_13, %c0_14] : memref<32x384xbf16, #tpu.memory_space<vmem>>, vector<32x384xbf16>
    %cst_15 = arith.constant dense<0.000000e+00> : vector<64x384xf32>
    %14 = tpu.matmul %12, %13, %cst_15 {dimension_numbers = #tpu.dot_dimension_numbers<[1], [0], [0], [1], [0, 0, 1, 1], [], []>} : vector<64x32xbf16>, vector<32x384xbf16>, vector<64x384xf32> -> vector<64x384xf32>
    %c0_16 = arith.constant 0 : index
    %c0_17 = arith.constant 0 : index
    %15 = vector.load %arg5[%c0_16, %c0_17] : memref<1x384xf32, #tpu.memory_space<vmem>>, vector<1x384xf32>
    %16 = vector.broadcast %15 : vector<1x384xf32> to vector<64x384xf32>
    %17 = arith.addf %14, %16 : vector<64x384xf32>
    %18 = vector.shape_cast %17 : vector<64x384xf32> to vector<8x8x384xf32>
    %c0_18 = arith.constant 0 : index
    %c0_19 = arith.constant 0 : index
    %c0_20 = arith.constant 0 : index
    %19 = vector.load %arg7[%c0_18, %c0_19, %c0_20] : memref<8x8x384xf32, #tpu.memory_space<vmem>>, vector<8x8x384xf32>
    tpu.vector_store %arg7[%c0_18, %c0_19, %c0_20], %18 {strides = array<i32>} : memref<8x8x384xf32, #tpu.memory_space<vmem>>, vector<8x8x384xf32>,
    return
  }
}

</mosaic_0001>

<llo_original>
// kernel: tpu_custom_call.1
$region0: #{tpu_custom_call.1}
  #allocation0 [shape = 'u32[]', space=smem, size = 0x4, offset = 0x4, fixed_abs, tag = 'smem constant byte address 0x4 - core index']
  #allocation1 [shape = 'u32[144,128]{1,0:T(1,128)}', space=vmem, size = 0x12000, scoped, tag = 'internal scratch']
  %s0 = inlined_call_operand.hbm [shape: f32[8,4,256], index: 0, kind: input, shape index: {}]
  %s1 = inlined_call_operand.hbm [shape: bf16[4,128], index: 1, kind: input, shape index: {}]
  %s2 = inlined_call_operand.vmem [shape: f32[1,128], index: 2, kind: input, shape index: {}]
  %s3 = inlined_call_operand.hbm [shape: bf16[8,8,32], index: 3, kind: input, shape index: {}]
  %s4 = inlined_call_operand.hbm [shape: bf16[32,384], index: 4, kind: input, shape index: {}]
  %s5 = inlined_call_operand.vmem [shape: f32[1,384], index: 5, kind: input, shape index: {}]
  %s6 = inlined_call_operand.hbm [shape: f32[8,128], index: 6, kind: output, shape index: {0}]
  %s7 = inlined_call_operand.hbm [shape: f32[8,8,384], index: 7, kind: output, shape index: {1}]
  %8 = xla_tuple %s6, %s7
  %s9 = sld [smem:[#allocation0]]
  $region58: #{tpu_custom_call.1} parent=0
    _
  %s11 = ssub.s32 1, %s9
  %s12 = scalar_select 0, %s11, %s9
  $region1: #{tpu_custom_call.1} parent=0
    #allocation2 [shape = 'u8[32768]{0}', space=vmem, size = 0x8000, scoped, tag = 'input window, operand 0, single buffered']
    #allocation3 [shape = 's32[1]{0}', space=sflag, size = 0x4, scoped, tag = 'scoped memory for tpu_custom_call.1']
    #allocation4 [shape = 's32[1]{0}', space=sflag, size = 0x4, scoped, tag = 'scoped memory for tpu_custom_call.1']
    #allocation5 [shape = 'u8[1024]{0}', space=vmem, size = 0x400, scoped, tag = 'input window, operand 1, single buffered']
    #allocation6 [shape = 's32[1]{0}', space=sflag, size = 0x4, scoped, tag = 'scoped memory for tpu_custom_call.1']
    #allocation7 [shape = 'u8[16384]{0}', space=vmem, size = 0x4000, scoped, tag = 'input window, operand 3, single buffered']
    #allocation8 [shape = 'u8[24576]{0}', space=vmem, size = 0x6000, scoped, tag = 'input window, operand 4, single buffered']
    #allocation9 [shape = 's32[1]{0}', space=sflag, size = 0x4, scoped, tag = 'scoped memory for tpu_custom_call.1']
    #allocation10 [shape = 'u8[4096]{0}', space=vmem, size = 0x1000, scoped, tag = 'output window, operand 0, single buffered']
    #allocation11 [shape = 'u8[98304]{0}', space=vmem, size = 0x18000, scoped, tag = 'output window, operand 1, single buffered']
    #allocation12 [shape = 's32[1]{0}', space=sflag, size = 0x4, scoped, tag = 'scoped memory for tpu_custom_call.1']
    %13 = vsyncpa [#allocation3], 0
    %14 = vsyncpa [#allocation6], 0
    %15 = vsyncpa [#allocation9], 0
    %16 = vsyncpa [#allocation4], 0
    %17 = vsyncpa [#allocation12], 0
    // Predicated region
    $region2: #{tpu_custom_call.1} parent=1 // pred_check
      _
    $region3: #{tpu_custom_call.1} parent=1 // pred_check_branch
      %19 = sbr.rel (0) target = $region5
    $region4: #{tpu_custom_call.1} parent=1 // pred_region
      %s21 = ssub.s32 1024, 1024
      %22 = vsyncadd [#allocation3], %s21
      %s23 = sshll.u32 [#allocation2], 4
      %s24 = int_to_ptr.vmem [resolvable:$true] %s23
      %29 = dma.hbm_to_vmem [thread:$0]  %s0, 1024, %s24, [#allocation3], 128, 128, 8
    $region5: #{tpu_custom_call.1} parent=1 // pred_fallthru
      _
    // Predicated region
    $region6: #{tpu_custom_call.1} parent=1 // pred_check
      _
    $region7: #{tpu_custom_call.1} parent=1 // pred_check_branch
      %31 = sbr.rel (0) target = $region9
    $region8: #{tpu_custom_call.1} parent=1 // pred_region
      %s33 = ssub.s32 32, 32
      %34 = vsyncadd [#allocation6], %s33
      %s36 = sshll.u32 [#allocation5], 4
      %s37 = int_to_ptr.vmem [resolvable:$true] %s36
      %39 = dma.hbm_to_vmem [thread:$0]  %s1, 32, %s37, [#allocation6]
    $region9: #{tpu_custom_call.1} parent=1 // pred_fallthru
      _
    // Predicated region
    $region10: #{tpu_custom_call.1} parent=1 // pred_check
      _
    $region11: #{tpu_custom_call.1} parent=1 // pred_check_branch
      %41 = sbr.rel (0) target = $region13
    $region12: #{tpu_custom_call.1} parent=1 // pred_region
      _
    $region13: #{tpu_custom_call.1} parent=1 // pred_fallthru
      _
    // Predicated region
    $region14: #{tpu_custom_call.1} parent=1 // pred_check
      _
    $region15: #{tpu_custom_call.1} parent=1 // pred_check_branch
      %43 = sbr.rel (0) target = $region17
    $region16: #{tpu_custom_call.1} parent=1 // pred_region
      %s45 = ssub.s32 512, 512
      %46 = vsyncadd [#allocation6], %s45
      %s47 = sshll.u32 [#allocation7], 4
      %s48 = int_to_ptr.vmem [resolvable:$true] %s47
      %53 = dma.hbm_to_vmem [thread:$0]  %s3, 512, %s48, [#allocation6], 64, 64, 4
    $region17: #{tpu_custom_call.1} parent=1 // pred_fallthru
      _
    // Predicated region
    $region18: #{tpu_custom_call.1} parent=1 // pred_check
      _
    $region19: #{tpu_custom_call.1} parent=1 // pred_check_branch
      %55 = sbr.rel (0) target = $region21
    $region20: #{tpu_custom_call.1} parent=1 // pred_region
      %s57 = ssub.s32 768, 768
      %58 = vsyncadd [#allocation9], %s57
      %s59 = sshll.u32 [#allocation8], 4
      %s60 = int_to_ptr.vmem [resolvable:$true] %s59
      %65 = dma.hbm_to_vmem [thread:$0]  %s4, 768, %s60, [#allocation9], 192, 192, 12
    $region21: #{tpu_custom_call.1} parent=1 // pred_fallthru
      _
    // Predicated region
    $region22: #{tpu_custom_call.1} parent=1 // pred_check
      _
    $region23: #{tpu_custom_call.1} parent=1 // pred_check_branch
      %67 = sbr.rel (0) target = $region25
    $region24: #{tpu_custom_call.1} parent=1 // pred_region
      _
    $region25: #{tpu_custom_call.1} parent=1 // pred_fallthru
      _
    // Predicated region
    $region26: #{tpu_custom_call.1} parent=1 // pred_check
      _
    $region27: #{tpu_custom_call.1} parent=1 // pred_check_branch
      %69 = sbr.rel (0) target = $region29
    $region28: #{tpu_custom_call.1} parent=1 // pred_region
      %70 = dma.done [#allocation3], 1024
    $region29: #{tpu_custom_call.1} parent=1 // pred_fallthru
      _
    // Predicated region
    $region30: #{tpu_custom_call.1} parent=1 // pred_check
      _
    $region31: #{tpu_custom_call.1} parent=1 // pred_check_branch
      %72 = sbr.rel (0) target = $region33
    $region32: #{tpu_custom_call.1} parent=1 // pred_region
      %73 = dma.done [#allocation6], 32
    $region33: #{tpu_custom_call.1} parent=1 // pred_fallthru
      _
    // Predicated region
    $region34: #{tpu_custom_call.1} parent=1 // pred_check
      _
    $region35: #{tpu_custom_call.1} parent=1 // pred_check_branch
      %75 = sbr.rel (0) target = $region37
    $region36: #{tpu_custom_call.1} parent=1 // pred_region
      %76 = dma.done [#allocation6], 512
    $region37: #{tpu_custom_call.1} parent=1 // pred_fallthru
      _
    // Predicated region
    $region38: #{tpu_custom_call.1} parent=1 // pred_check
      _
    $region39: #{tpu_custom_call.1} parent=1 // pred_check_branch
      %78 = sbr.rel (0) target = $region41
    $region40: #{tpu_custom_call.1} parent=1 // pred_region
      %79 = dma.done [#allocation9], 768
    $region41: #{tpu_custom_call.1} parent=1 // pred_fallthru
      _
    %v81 = vld [vmem:[#allocation2] sm:$0xff]
    %v82 = vld [vmem:[#allocation2 + $0x8] sm:$0xff]
    %v83 = vld [vmem:[#allocation2 + $0x10] sm:$0xff]
    %v84 = vld [vmem:[#allocation2 + $0x18] sm:$0xff]
    %v85 = vld [vmem:[#allocation2 + $0x20] sm:$0xff]
    %v86 = vld [vmem:[#allocation2 + $0x28] sm:$0xff]
    %v87 = vld [vmem:[#allocation2 + $0x30] sm:$0xff]
    %v88 = vld [vmem:[#allocation2 + $0x38] sm:$0xff]
    %v97 = vcombine.high %v81, %v81
    %v98 = vcombine.high %v82, %v82
    %v99 = vcombine.high %v83, %v83
    %v100 = vcombine.high %v84, %v84
    %v101 = vcombine.high %v85, %v85
    %v102 = vcombine.high %v86, %v86
    %v103 = vcombine.high %v87, %v87
    %v104 = vcombine.high %v88, %v88
    %vm113 = vcmask 1043456
    %v114 = vsel %vm113, %v81, 0.0
    %v115 = vsel %vm113, %v97, 0.0
    %v116 = vadd.f32 %v114, %v115
    %117 = vadd.xlane.f32.xlu0 %v116
    %v118 = vpop.xlane.xlu0 %117
    %v119 = vsel %vm113, %v82, 0.0
    %v120 = vsel %vm113, %v98, 0.0
    %v121 = vadd.f32 %v119, %v120
    %122 = vadd.xlane.f32.xlu0 %v121
    %v123 = vpop.xlane.xlu0 %122
    %v124 = vsel %vm113, %v83, 0.0
    %v125 = vsel %vm113, %v99, 0.0
    %v126 = vadd.f32 %v124, %v125
    %127 = vadd.xlane.f32.xlu0 %v126
    %v128 = vpop.xlane.xlu0 %127
    %v129 = vsel %vm113, %v84, 0.0
    %v130 = vsel %vm113, %v100, 0.0
    %v131 = vadd.f32 %v129, %v130
    %132 = vadd.xlane.f32.xlu0 %v131
    %v133 = vpop.xlane.xlu0 %132
    %v134 = vsel %vm113, %v85, 0.0
    %v135 = vsel %vm113, %v101, 0.0
    %v136 = vadd.f32 %v134, %v135
    %137 = vadd.xlane.f32.xlu0 %v136
    %v138 = vpop.xlane.xlu0 %137
    %v139 = vsel %vm113, %v86, 0.0
    %v140 = vsel %vm113, %v102, 0.0
    %v141 = vadd.f32 %v139, %v140
    %142 = vadd.xlane.f32.xlu0 %v141
    %v143 = vpop.xlane.xlu0 %142
    %v144 = vsel %vm113, %v87, 0.0
    %v145 = vsel %vm113, %v103, 0.0
    %v146 = vadd.f32 %v144, %v145
    %147 = vadd.xlane.f32.xlu0 %v146
    %v148 = vpop.xlane.xlu0 %147
    %v149 = vsel %vm113, %v88, 0.0
    %v150 = vsel %vm113, %v104, 0.0
    %v151 = vadd.f32 %v149, %v150
    %152 = vadd.xlane.f32.xlu0 %v151
    %v153 = vpop.xlane.xlu0 %152
    %v154 = vrcp.pop 256.0
    %v155 = vmul.f32 %v118, %v154
    %v156 = vmul.f32 %v123, %v154
    %v157 = vmul.f32 %v128, %v154
    %v158 = vmul.f32 %v133, %v154
    %v159 = vmul.f32 %v138, %v154
    %v160 = vmul.f32 %v143, %v154
    %v161 = vmul.f32 %v148, %v154
    %v162 = vmul.f32 %v153, %v154
    %v163 = vpack.c.bf16 %v155, %v155
    %v164 = vpack.c.bf16 %v156, %v156
    %v165 = vpack.c.bf16 %v157, %v157
    %v166 = vpack.c.bf16 %v158, %v158
    %v167 = vpack.c.bf16 %v159, %v159
    %v168 = vpack.c.bf16 %v160, %v160
    %v169 = vpack.c.bf16 %v161, %v161
    %v170 = vpack.c.bf16 %v162, %v162
    %v171 = vld [vmem:[#allocation5] sm:$0x3]
    %v172 = vld [vmem:[%s2] sm:$0x1]
    %v174 = vlaneseq
    %v175 = vshrl.u32 %v174, 7
    %v176 = vsub.s32 0, %v175
    %v177 = vrot.slane %v172, %v176
    %v187 = vunpack.c.l.b16 %v163
    %v188 = vunpack.c.l.b16 %v164
    %v189 = vunpack.c.l.b16 %v165
    %v190 = vunpack.c.l.b16 %v166
    %v191 = vunpack.c.l.b16 %v167
    %v192 = vunpack.c.l.b16 %v168
    %v193 = vunpack.c.l.b16 %v169
    %v194 = vunpack.c.l.b16 %v170
    %v195 = vlaneseq
    %v196 = vand.u32 %v195, 127
    %v197 = vlaneseq
    %v198 = vshrl.u32 %v197, 7
    %v199 = vsub.s32 %v196, %v198
    %v200 = vrot.slane %v187, %v199
    %v201 = vlaneseq
    %v202 = vshrl.u32 %v201, 7
    %v203 = vsub.s32 %v196, %v202
    %v204 = vrot.slane %v188, %v203
    %v205 = vlaneseq
    %v206 = vshrl.u32 %v205, 7
    %v207 = vsub.s32 %v196, %v206
    %v208 = vrot.slane %v189, %v207
    %v209 = vlaneseq
    %v210 = vshrl.u32 %v209, 7
    %v211 = vsub.s32 %v196, %v210
    %v212 = vrot.slane %v190, %v211
    %v213 = vlaneseq
    %v214 = vshrl.u32 %v213, 7
    %v215 = vsub.s32 %v196, %v214
    %v216 = vrot.slane %v191, %v215
    %v217 = vlaneseq
    %v218 = vshrl.u32 %v217, 7
    %v219 = vsub.s32 %v196, %v218
    %v220 = vrot.slane %v192, %v219
    %v221 = vlaneseq
    %v222 = vshrl.u32 %v221, 7
    %v223 = vsub.s32 %v196, %v222
    %v224 = vrot.slane %v193, %v223
    %v225 = vlaneseq
    %v226 = vshrl.u32 %v225, 7
    %v227 = vsub.s32 %v196, %v226
    %v228 = vrot.slane %v194, %v227
    %vm229 = vcmask 1041409
    %v230 = vsel %vm229, %v204, %v200
    %vm231 = vcmask 1042434
    %v232 = vsel %vm231, %v208, %v230
    %vm233 = vcmask 1043459
    %v234 = vsel %vm233, %v212, %v232
    %vm235 = vcmask 1044484
    %v236 = vsel %vm235, %v216, %v234
    %vm237 = vcmask 1045509
    %v238 = vsel %vm237, %v220, %v236
    %vm239 = vcmask 1046534
    %v240 = vsel %vm239, %v224, %v238
    %vm241 = vcmask 1047559
    %v242 = vsel %vm241, %v228, %v240
    %v243 = vpack.c.b16 %v242, %v242
    %vm244 = vcmask 31744
    %v246 = vsel %vm244, %v243, 0
    %vm248 = vcmask 1041408
    %v250 = vsel %vm248, %v171, 0
    %252 = vmatprep.subr.bf16.mxu0 0
    %253 = vmatpush1.bf16.msra.mxu0 0
    %254 = vmatprep.subr.bf16.mxu0 0
    %255 = vmatpush1.bf16.msra.mxu0 0
    %256 = vmatprep.subr.bf16.mxu0 0
    %257 = vmatpush1.bf16.msra.mxu0 0
    %258 = vmatprep.subr.bf16.mxu0 0
    %259 = vmatpush1.bf16.msra.mxu0 0
    %260 = vmatprep.subr.bf16.mxu0 0
    %261 = vmatpush1.bf16.msra.mxu0 0
    %262 = vmatprep.subr.bf16.mxu0 0
    %263 = vmatpush1.bf16.msra.mxu0 0
    %264 = vmatprep.subr.bf16.mxu0 0
    %265 = vmatpush1.bf16.msra.mxu0 0
    %266 = vmatprep.subr.bf16.mxu0 0
    %267 = vmatpush1.bf16.msra.mxu0 %v250
    %268 = vmatprep.subr.bf16.mxu0 0
    %269 = vmatpush2.bf16.msra.mxu0 0
    %270 = vmatprep.subr.bf16.mxu0 0
    %271 = vmatpush2.bf16.msra.mxu0 0
    %272 = vmatprep.subr.bf16.mxu0 0
    %273 = vmatpush2.bf16.msra.mxu0 0
    %274 = vmatprep.subr.bf16.mxu0 0
    %275 = vmatpush2.bf16.msra.mxu0 0
    %276 = vmatprep.subr.bf16.mxu0 0
    %277 = vmatpush2.bf16.msra.mxu0 0
    %278 = vmatprep.subr.bf16.mxu0 0
    %279 = vmatpush2.bf16.msra.mxu0 0
    %280 = vmatprep.subr.bf16.mxu0 0
    %281 = vmatpush2.bf16.msra.mxu0 0
    %282 = vmatprep.subr.bf16.mxu0 0
    %283 = vmatpush2.bf16.msra.mxu0 0
    %284 = vmatprep.mubr.bf16.mxu0 0
    %285 = vmatmul.mubr.bf16.gmra.mxu0 %v246
    %v286 = vpop.f32.mrf.mxu0
    %v287 = vadd.f32 %v177, %v286
    %v288 = vpop.f32.mrf.mxu0
    %v289 = vpop.f32.mrf.mxu0
    %v290 = vpop.f32.mrf.mxu0
    %291 = vdwg.mxu0
    %292 = vst [vmem:[#allocation10] sm:$0xff] %v287
    %v293 = vld [vmem:[#allocation7] sm:$0xf]
    %v294 = vld [vmem:[#allocation7 + $0x4] sm:$0xf]
    %v295 = vld [vmem:[#allocation7 + $0x8] sm:$0xf]
    %v296 = vld [vmem:[#allocation7 + $0xc] sm:$0xf]
    %v297 = vld [vmem:[#allocation7 + $0x10] sm:$0xf]
    %v298 = vld [vmem:[#allocation7 + $0x14] sm:$0xf]
    %v299 = vld [vmem:[#allocation7 + $0x18] sm:$0xf]
    %v300 = vld [vmem:[#allocation7 + $0x1c] sm:$0xf]
    %v301 = vld [vmem:[#allocation8] sm:$0xff]
    %v302 = vld [vmem:[#allocation8 + $0x8] sm:$0xf]
    %v303 = vld [vmem:[#allocation8 + $0xc] sm:$0xff]
    %v304 = vld [vmem:[#allocation8 + $0x14] sm:$0xf]
    %v305 = vld [vmem:[#allocation8 + $0x18] sm:$0xff]
    %v306 = vld [vmem:[#allocation8 + $0x20] sm:$0xf]
    %v307 = vld [vmem:[#allocation8 + $0x24] sm:$0xff]
    %v308 = vld [vmem:[#allocation8 + $0x2c] sm:$0xf]
    %v309 = vld [vmem:[%s5] sm:$0x7]
    %v311 = vlaneseq
    %v312 = vshrl.u32 %v311, 7
    %v313 = vsub.s32 0, %v312
    %v314 = vrot.slane %v309, %v313
    %v315 = vlaneseq
    %v316 = vshrl.u32 %v315, 7
    %v317 = vsub.s32 1, %v316
    %v318 = vrot.slane %v309, %v317
    %v319 = vlaneseq
    %v320 = vshrl.u32 %v319, 7
    %v321 = vsub.s32 2, %v320
    %v322 = vrot.slane %v309, %v321
    %v334 = vunpack.c.l.b16 %v293
    %v335 = vunpack.c.l.b16 %v294
    %v336 = vunpack.c.l.b16 %v295
    %v337 = vunpack.c.l.b16 %v296
    %v338 = vunpack.c.l.b16 %v297
    %v339 = vunpack.c.l.b16 %v298
    %v340 = vunpack.c.l.b16 %v299
    %v341 = vunpack.c.l.b16 %v300
    %v342 = vpack.c.b16 %v335, %v334
    %v343 = vpack.c.b16 %v337, %v336
    %v344 = vpack.c.b16 %v339, %v338
    %v345 = vpack.c.b16 %v341, %v340
    %v354 = vunpack.c.l.b16 %v301
    %v355 = vunpack.c.h.b16 %v301
    %v356 = vunpack.c.l.b16 %v302
    %v357 = vunpack.c.l.b16 %v303
    %v358 = vunpack.c.h.b16 %v303
    %v359 = vunpack.c.l.b16 %v304
    %v360 = vunpack.c.l.b16 %v305
    %v361 = vunpack.c.h.b16 %v305
    %v362 = vunpack.c.l.b16 %v306
    %v363 = vunpack.c.l.b16 %v307
    %v364 = vunpack.c.h.b16 %v307
    %v365 = vunpack.c.l.b16 %v308
    %v366 = vpack.c.b16 %v357, %v354
    %v367 = vpack.c.b16 %v358, %v355
    %v368 = vpack.c.b16 %v359, %v356
    %v369 = vpack.c.b16 %v363, %v360
    %v370 = vpack.c.b16 %v364, %v361
    %v371 = vpack.c.b16 %v365, %v362
    %vm378 = vcmask 261120
    %v380 = vsel %vm378, %v342, 0
    %v383 = vsel %vm378, %v343, 0
    %v386 = vsel %vm378, %v344, 0
    %v389 = vsel %vm378, %v345, 0
    %391 = vmatprep.subr.bf16.mxu0 0
    %392 = vmatpush1.bf16.msra.mxu0 0
    %393 = vmatprep.subr.bf16.mxu0 0
    %394 = vmatpush1.bf16.msra.mxu0 0
    %395 = vmatprep.subr.bf16.mxu0 0
    %396 = vmatpush1.bf16.msra.mxu0 0
    %397 = vmatprep.subr.bf16.mxu0 0
    %398 = vmatpush1.bf16.msra.mxu0 0
    %399 = vmatprep.subr.bf16.mxu0 0
    %400 = vmatpush1.bf16.msra.mxu0 0
    %401 = vmatprep.subr.bf16.mxu0 0
    %402 = vmatpush1.bf16.msra.mxu0 0
    %403 = vmatprep.subr.bf16.mxu0 %v370
    %404 = vmatpush1.bf16.msra.mxu0 %v369
    %405 = vmatprep.subr.bf16.mxu0 %v367
    %406 = vmatpush1.bf16.msra.mxu0 %v366
    %407 = vmatprep.subr.bf16.mxu0 0
    %408 = vmatpush2.bf16.msra.mxu0 0
    %409 = vmatprep.subr.bf16.mxu0 0
    %410 = vmatpush2.bf16.msra.mxu0 0
    %411 = vmatprep.subr.bf16.mxu0 0
    %412 = vmatpush2.bf16.msra.mxu0 0
    %413 = vmatprep.subr.bf16.mxu0 0
    %414 = vmatpush2.bf16.msra.mxu0 0
    %415 = vmatprep.subr.bf16.mxu0 0
    %416 = vmatpush2.bf16.msra.mxu0 0
    %417 = vmatprep.subr.bf16.mxu0 0
    %418 = vmatpush2.bf16.msra.mxu0 0
    %419 = vmatprep.subr.bf16.mxu0 0
    %420 = vmatpush2.bf16.msra.mxu0 0
    %421 = vmatprep.subr.bf16.mxu0 0
    %422 = vmatpush2.bf16.msra.mxu0 0
    %423 = vmatprep.mubr.bf16.mxu0 0
    %424 = vmatmul.mubr.bf16.gmra.mxu0 %v380
    %v425 = vpop.f32.mrf.mxu0
    %v426 = vadd.f32 %v314, %v425
    %v427 = vpop.f32.mrf.mxu0
    %v428 = vadd.f32 %v318, %v427
    %v429 = vpop.f32.mrf.mxu0
    %v430 = vadd.f32 %v314, %v429
    %v431 = vpop.f32.mrf.mxu0
    %v432 = vadd.f32 %v318, %v431
    %433 = vmatprep.mubr.bf16.mxu0 0
    %434 = vmatmul.mubr.bf16.gmra.mxu0 %v383
    %v435 = vpop.f32.mrf.mxu0
    %v436 = vadd.f32 %v314, %v435
    %v437 = vpop.f32.mrf.mxu0
    %v438 = vadd.f32 %v318, %v437
    %v439 = vpop.f32.mrf.mxu0
    %v440 = vadd.f32 %v314, %v439
    %v441 = vpop.f32.mrf.mxu0
    %v442 = vadd.f32 %v318, %v441
    %443 = vmatprep.mubr.bf16.mxu0 0
    %444 = vmatmul.mubr.bf16.gmra.mxu0 %v386
    %v445 = vpop.f32.mrf.mxu0
    %v446 = vadd.f32 %v314, %v445
    %v447 = vpop.f32.mrf.mxu0
    %v448 = vadd.f32 %v318, %v447
    %v449 = vpop.f32.mrf.mxu0
    %v450 = vadd.f32 %v314, %v449
    %v451 = vpop.f32.mrf.mxu0
    %v452 = vadd.f32 %v318, %v451
    %453 = vmatprep.mubr.bf16.mxu0 0
    %454 = vmatmul.mubr.bf16.gmra.mxu0 %v389
    %v455 = vpop.f32.mrf.mxu0
    %v456 = vadd.f32 %v314, %v455
    %v457 = vpop.f32.mrf.mxu0
    %v458 = vadd.f32 %v318, %v457
    %v459 = vpop.f32.mrf.mxu0
    %v460 = vadd.f32 %v314, %v459
    %v461 = vpop.f32.mrf.mxu0
    %v462 = vadd.f32 %v318, %v461
    %463 = vdwg.mxu0
    %464 = vmatprep.subr.bf16.mxu0 0
    %465 = vmatpush1.bf16.msra.mxu0 0
    %466 = vmatprep.subr.bf16.mxu0 0
    %467 = vmatpush1.bf16.msra.mxu0 0
    %468 = vmatprep.subr.bf16.mxu0 0
    %469 = vmatpush1.bf16.msra.mxu0 0
    %470 = vmatprep.subr.bf16.mxu0 0
    %471 = vmatpush1.bf16.msra.mxu0 0
    %472 = vmatprep.subr.bf16.mxu0 0
    %473 = vmatpush1.bf16.msra.mxu0 0
    %474 = vmatprep.subr.bf16.mxu0 0
    %475 = vmatpush1.bf16.msra.mxu0 0
    %476 = vmatprep.subr.bf16.mxu0 0
    %477 = vmatpush1.bf16.msra.mxu0 %v371
    %478 = vmatprep.subr.bf16.mxu0 0
    %479 = vmatpush1.bf16.msra.mxu0 %v368
    %480 = vmatprep.subr.bf16.mxu0 0
    %481 = vmatpush2.bf16.msra.mxu0 0
    %482 = vmatprep.subr.bf16.mxu0 0
    %483 = vmatpush2.bf16.msra.mxu0 0
    %484 = vmatprep.subr.bf16.mxu0 0
    %485 = vmatpush2.bf16.msra.mxu0 0
    %486 = vmatprep.subr.bf16.mxu0 0
    %487 = vmatpush2.bf16.msra.mxu0 0
    %488 = vmatprep.subr.bf16.mxu0 0
    %489 = vmatpush2.bf16.msra.mxu0 0
    %490 = vmatprep.subr.bf16.mxu0 0
    %491 = vmatpush2.bf16.msra.mxu0 0
    %492 = vmatprep.subr.bf16.mxu0 0
    %493 = vmatpush2.bf16.msra.mxu0 0
    %494 = vmatprep.subr.bf16.mxu0 0
    %495 = vmatpush2.bf16.msra.mxu0 0
    %496 = vmatprep.mubr.bf16.mxu0 0
    %497 = vmatmul.mubr.bf16.gmra.mxu0 %v380
    %v498 = vpop.f32.mrf.mxu0
    %v499 = vadd.f32 %v322, %v498
    %v500 = vpop.f32.mrf.mxu0
    %v501 = vpop.f32.mrf.mxu0
    %v502 = vadd.f32 %v322, %v501
    %v503 = vpop.f32.mrf.mxu0
    %504 = vmatprep.mubr.bf16.mxu0 0
    %505 = vmatmul.mubr.bf16.gmra.mxu0 %v383
    %v506 = vpop.f32.mrf.mxu0
    %v507 = vadd.f32 %v322, %v506
    %v508 = vpop.f32.mrf.mxu0
    %v509 = vpop.f32.mrf.mxu0
    %v510 = vadd.f32 %v322, %v509
    %v511 = vpop.f32.mrf.mxu0
    %512 = vmatprep.mubr.bf16.mxu0 0
    %513 = vmatmul.mubr.bf16.gmra.mxu0 %v386
    %v514 = vpop.f32.mrf.mxu0
    %v515 = vadd.f32 %v322, %v514
    %v516 = vpop.f32.mrf.mxu0
    %v517 = vpop.f32.mrf.mxu0
    %v518 = vadd.f32 %v322, %v517
    %v519 = vpop.f32.mrf.mxu0
    %520 = vmatprep.mubr.bf16.mxu0 0
    %521 = vmatmul.mubr.bf16.gmra.mxu0 %v389
    %v522 = vpop.f32.mrf.mxu0
    %v523 = vadd.f32 %v322, %v522
    %v524 = vpop.f32.mrf.mxu0
    %v525 = vpop.f32.mrf.mxu0
    %v526 = vadd.f32 %v322, %v525
    %v527 = vpop.f32.mrf.mxu0
    %528 = vdwg.mxu0
    %529 = vst [vmem:[#allocation11] sm:$0xff] %v426
    %530 = vst [vmem:[#allocation11 + $0x8] sm:$0xff] %v428
    %531 = vst [vmem:[#allocation11 + $0x10] sm:$0xff] %v499
    %532 = vst [vmem:[#allocation11 + $0x18] sm:$0xff] %v430
    %533 = vst [vmem:[#allocation11 + $0x20] sm:$0xff] %v432
    %534 = vst [vmem:[#allocation11 + $0x28] sm:$0xff] %v502
    %535 = vst [vmem:[#allocation11 + $0x30] sm:$0xff] %v436
    %536 = vst [vmem:[#allocation11 + $0x38] sm:$0xff] %v438
    %537 = vst [vmem:[#allocation11 + $0x40] sm:$0xff] %v507
    %538 = vst [vmem:[#allocation11 + $0x48] sm:$0xff] %v440
    %539 = vst [vmem:[#allocation11 + $0x50] sm:$0xff] %v442
    %540 = vst [vmem:[#allocation11 + $0x58] sm:$0xff] %v510
    %541 = vst [vmem:[#allocation11 + $0x60] sm:$0xff] %v446
    %542 = vst [vmem:[#allocation11 + $0x68] sm:$0xff] %v448
    %543 = vst [vmem:[#allocation11 + $0x70] sm:$0xff] %v515
    %544 = vst [vmem:[#allocation11 + $0x78] sm:$0xff] %v450
    %545 = vst [vmem:[#allocation11 + $0x80] sm:$0xff] %v452
    %546 = vst [vmem:[#allocation11 + $0x88] sm:$0xff] %v518
    %547 = vst [vmem:[#allocation11 + $0x90] sm:$0xff] %v456
    %548 = vst [vmem:[#allocation11 + $0x98] sm:$0xff] %v458
    %549 = vst [vmem:[#allocation11 + $0xa0] sm:$0xff] %v523
    %550 = vst [vmem:[#allocation11 + $0xa8] sm:$0xff] %v460
    %551 = vst [vmem:[#allocation11 + $0xb0] sm:$0xff] %v462
    %552 = vst [vmem:[#allocation11 + $0xb8] sm:$0xff] %v526
    // Predicated region
    $region42: #{tpu_custom_call.1} parent=1 // pred_check
      _
    $region43: #{tpu_custom_call.1} parent=1 // pred_check_branch
      %554 = sbr.rel (0) target = $region45
    $region44: #{tpu_custom_call.1} parent=1 // pred_region
      %s556 = ssub.s32 128, 128
      %557 = vsyncadd [#allocation4], %s556
      %s559 = sshll.u32 [#allocation10], 4
      %s560 = int_to_ptr.vmem [resolvable:$true] %s559
      %562 = dma.vmem_to_hbm [thread:$0]  %s560, 128, %s6, [#allocation4]
    $region45: #{tpu_custom_call.1} parent=1 // pred_fallthru
      _
    // Predicated region
    $region46: #{tpu_custom_call.1} parent=1 // pred_check
      _
    $region47: #{tpu_custom_call.1} parent=1 // pred_check_branch
      %564 = sbr.rel (0) target = $region49
    $region48: #{tpu_custom_call.1} parent=1 // pred_region
      %s566 = ssub.s32 3072, 3072
      %567 = vsyncadd [#allocation12], %s566
      %s568 = sshll.u32 [#allocation11], 4
      %s569 = int_to_ptr.vmem [resolvable:$true] %s568
      %574 = dma.vmem_to_hbm [thread:$0]  %s569, 3072, %s7, [#allocation12], 384, 384, 24
    $region49: #{tpu_custom_call.1} parent=1 // pred_fallthru
      _
    // Predicated region
    $region50: #{tpu_custom_call.1} parent=1 // pred_check
      _
    $region51: #{tpu_custom_call.1} parent=1 // pred_check_branch
      %576 = sbr.rel (0) target = $region53
    $region52: #{tpu_custom_call.1} parent=1 // pred_region
      %577 = dma.done [#allocation4], 128
    $region53: #{tpu_custom_call.1} parent=1 // pred_fallthru
      _
    // Predicated region
    $region54: #{tpu_custom_call.1} parent=1 // pred_check
      _
    $region55: #{tpu_custom_call.1} parent=1 // pred_check_branch
      %579 = sbr.rel (0) target = $region57
    $region56: #{tpu_custom_call.1} parent=1 // pred_region
      %580 = dma.done [#allocation12], 3072
    $region57: #{tpu_custom_call.1} parent=1 // pred_fallthru
      _
    %581 = vsyncpa [#allocation3], 1
    %582 = vsyncpa [#allocation6], 1
    %583 = vsyncpa [#allocation9], 1
    %584 = vsyncpa [#allocation4], 1
    %585 = vsyncpa [#allocation12], 1

</llo_original>
